<compile_context>
chip_gen: v7x
topology: tpu7x:2x2x1
jax: 0.10.0
libtpu: 0.0.40
codegen_flags: <defaults>
</compile_context>

<pallas_src>
import jax
import jax.numpy as jnp
from jax import lax
from jax.experimental import pallas as pl
from jax.experimental.pallas import tpu as pltpu

_BIG = 1e30      # finite sentinel, >> any realizable squared distance
_INIT = 3.0e38   # init value for the running column-min (still finite f32)


def _round_up(x, m):
    return ((x + m - 1) // m) * m


def _chamfer_kernel(v_ref, l_ref, mv_ref, ml_ref, out_ref,
                    brow_ref, colmin_ref, c2l_ref, nv_ref):
    vi = pl.program_id(1)
    n_vi = pl.num_programs(1)

    mv = mv_ref[...].astype(jnp.float32)          # (tile_v, 1)
    ml = ml_ref[...].astype(jnp.float32)          # (1, Nl_pad)

    # ---- per-batch init (first Nv tile) -----------------------------------
    @pl.when(vi == 0)
    def _init():
        yf = l_ref[...].astype(jnp.float32)       # (Nl_pad, D)
        ysq = yf * yf
        # ones(1,D) contracted with ysq over D -> lane-major (1, Nl_pad) row
        # of squared norms (avoids a keepdims+transpose relayout).
        b_row = lax.dot_general(
            jnp.ones((1, ysq.shape[-1]), jnp.float32), ysq,
            dimension_numbers=(((1,), (1,)), ((), ())),
            preferred_element_type=jnp.float32)
        brow_ref[...] = b_row + _BIG * (1.0 - ml)           # sentinel on masked cols
        colmin_ref[...] = jnp.full_like(colmin_ref, _INIT)
        c2l_ref[...] = jnp.zeros_like(c2l_ref)
        nv_ref[...] = jnp.zeros_like(nv_ref)

    # ---- per-tile pairwise distances --------------------------------------
    x = v_ref[...]                                 # (tile_v, D), native dtype
    xf = x.astype(jnp.float32)
    a_col = jnp.sum(xf * xf, axis=-1, keepdims=True)        # (tile_v, 1)
    a_col = a_col + _BIG * (1.0 - mv)                        # sentinel on masked rows

    # -2<x,y>: fold -2 into the small per-step operand; MXU in native dtype.
    xs = x * jnp.asarray(-2.0, dtype=x.dtype)
    ab = lax.dot_general(
        xs, l_ref[...],
        dimension_numbers=(((1,), (1,)), ((), ())),
        preferred_element_type=jnp.float32)                  # (tile_v, Nl_pad)

    # Single live (tile_v, Nl_pad) tile with both maskings folded in.
    p = ab + a_col + brow_ref[...]

    # clip -> lang partial: min over lanes (j), mask by mv, accumulate.
    row_min = jnp.min(p, axis=1, keepdims=True)              # (tile_v, 1)
    c2l_ref[...] += jnp.sum(row_min * mv, keepdims=True)     # (1, 1)
    nv_ref[...] += jnp.sum(mv, keepdims=True)                # (1, 1)

    # lang -> clip partial: running min over sublanes (i) across Nv tiles.
    colmin_ref[...] = jnp.minimum(colmin_ref[...],
                                  jnp.min(p, axis=0, keepdims=True))

    # ---- per-batch finalize (last Nv tile) ---------------------------------
    @pl.when(vi == n_vi - 1)
    def _finish():
        nl = jnp.sum(ml, keepdims=True)                              # (1, 1)
        l2c = jnp.sum(colmin_ref[...] * ml, keepdims=True) / nl      # (1, 1)
        c2l = c2l_ref[...] / nv_ref[...]                             # (1, 1)
        out_ref[...] = (c2l + l2c).astype(out_ref.dtype)


def double_masked_chamfer_distance(video_feat, lang_feat, mask_v, mask_l):
    """video_feat: (B,Nv,D), lang_feat: (B,Nl,D), mask_v: (B,Nv), mask_l: (B,Nl) -> (B,)"""
    B, Nv, D = video_feat.shape
    _, Nl, _ = lang_feat.shape

    # Row tile: <=256 (MXU-friendly on v5e/v6e/v7x), 8-aligned for small Nv.
    tile_v = 256 if Nv >= 256 else _round_up(Nv, 8)
    nv_pad = _round_up(Nv, tile_v)
    nl_pad = _round_up(Nl, 128)        # lane-dense pairwise tile / XLU min
    num_vi = nv_pad // tile_v

    v = video_feat
    l = lang_feat
    mv = jnp.asarray(mask_v, jnp.float32)
    ml = jnp.asarray(mask_l, jnp.float32)
    if nv_pad != Nv:
        v = jnp.pad(v, ((0, 0), (0, nv_pad - Nv), (0, 0)))
        mv = jnp.pad(mv, ((0, 0), (0, nv_pad - Nv)))
    if nl_pad != Nl:
        l = jnp.pad(l, ((0, 0), (0, nl_pad - Nl), (0, 0)))
        ml = jnp.pad(ml, ((0, 0), (0, nl_pad - Nl)))
    mv = mv[:, :, None]                # (B, nv_pad, 1)  column layout
    ml = ml[:, None, :]                # (B, 1, nl_pad)  row (lane) layout

    grid_spec = pltpu.PrefetchScalarGridSpec(
        num_scalar_prefetch=0,
        grid=(B, num_vi),
        in_specs=[
            pl.BlockSpec((None, tile_v, D), lambda b, vi: (b, vi, 0)),   # video tile
            pl.BlockSpec((None, nl_pad, D), lambda b, vi: (b, 0, 0)),    # lang (per batch)
            pl.BlockSpec((None, tile_v, 1), lambda b, vi: (b, vi, 0)),   # mask_v tile
            pl.BlockSpec((None, 1, nl_pad), lambda b, vi: (b, 0, 0)),    # mask_l row
        ],
        out_specs=pl.BlockSpec((None, 1, 1), lambda b, vi: (b, 0, 0)),
        scratch_shapes=[
            pltpu.VMEM((1, nl_pad), jnp.float32),   # masked ||y||^2 row
            pltpu.VMEM((1, nl_pad), jnp.float32),   # running column-min
            pltpu.VMEM((1, 1), jnp.float32),        # clip->lang numerator
            pltpu.VMEM((1, 1), jnp.float32),        # sum(mask_v)
        ],
    )

    out = pl.pallas_call(
        _chamfer_kernel,
        out_shape=jax.ShapeDtypeStruct((B, 1, 1), jnp.float32),
        grid_spec=grid_spec,
        compiler_params=pltpu.CompilerParams(
            dimension_semantics=("parallel", "arbitrary"),
            vmem_limit_bytes=48 * 1024 * 1024,
        ),
    )(v, l, mv, ml)
    return out[:, 0, 0]


def _reference(video_feat, lang_feat, mask_v, mask_l):
    """Pure-JAX reference mirroring the PyTorch forward (global-max masking)."""
    a = jnp.sum(video_feat ** 2, axis=2, keepdims=True)
    b = jnp.sum(lang_feat ** 2, axis=2, keepdims=True)
    ab = jnp.einsum("bvd,bld->bvl", video_feat, lang_feat)
    p = a - 2.0 * ab + jnp.transpose(b, (0, 2, 1))
    neg = 1.0 - mask_v[:, :, None] * mask_l[:, None, :]
    pm = p + neg * jnp.max(p)
    nv = jnp.sum(mask_v, axis=1)
    nl = jnp.sum(mask_l, axis=1)
    c2l = jnp.sum(jnp.min(pm, axis=2) * mask_v, axis=1) / nv
    l2c = jnp.sum(jnp.min(pm, axis=1) * mask_l, axis=1) / nl
    return l2c + c2l


if __name__ == "__main__":
    B, Nv, Nl, D = 2, 16, 8, 32
    key = jax.random.PRNGKey(0)
    k1, k2, k3, k4 = jax.random.split(key, 4)

    video_feat = jax.random.normal(k1, (B, Nv, D), dtype=jnp.float32)
    lang_feat = jax.random.normal(k2, (B, Nl, D), dtype=jnp.float32)
    mask_v = jax.random.bernoulli(k3, 0.7, (B, Nv)).astype(jnp.float32)
    mask_l = jax.random.bernoulli(k4, 0.7, (B, Nl)).astype(jnp.float32)
    # guarantee at least one valid position per row (avoid divide-by-zero)
    mask_v = mask_v.at[:, 0].set(1.0)
    mask_l = mask_l.at[:, 0].set(1.0)

    out = double_masked_chamfer_distance(video_feat, lang_feat, mask_v, mask_l)
    out = jax.block_until_ready(out)

    ref = jax.block_until_ready(_reference(video_feat, lang_feat, mask_v, mask_l))
    assert out.shape == (B,)
    assert jnp.allclose(out, ref, rtol=1e-3, atol=1e-3), (out, ref)

    print("KERNEL_OK")
</pallas_src>

<mosaic_0001>
module attributes {stable_mosaic.version = 11 : i64} {
  func.func @_chamfer_kernel(%arg0: i32, %arg1: i32, %arg2: memref<1x16x32xf32, #tpu.memory_space<vmem>>, %arg3: memref<1x128x32xf32, #tpu.memory_space<vmem>>, %arg4: memref<1x16x1xf32, #tpu.memory_space<vmem>>, %arg5: memref<1x1x128xf32, #tpu.memory_space<vmem>>, %arg6: memref<1x1x1xf32, #tpu.memory_space<vmem>>, %arg7: memref<1x128xf32, #tpu.memory_space<vmem>>, %arg8: memref<1x128xf32, #tpu.memory_space<vmem>>, %arg9: memref<1x1xf32, #tpu.memory_space<vmem>>, %arg10: memref<1x1xf32, #tpu.memory_space<vmem>>) attributes {dimension_semantics = [#tpu.dimension_semantics<parallel>, #tpu.dimension_semantics<arbitrary>], iteration_bounds = array<i64: 2, 1>, scalar_prefetch = 0 : i64, scratch_operands = 4 : i64, tpu.core_type = #tpu.core_type<tc>, window_params = [{transform_indices = @transform_0, window_bounds = array<i64: 1, 16, 32>}, {transform_indices = @transform_1, window_bounds = array<i64: 1, 128, 32>}, {transform_indices = @transform_2, window_bounds = array<i64: 1, 16, 1>}, {transform_indices = @transform_3, window_bounds = array<i64: 1, 1, 128>}, {transform_indices = @transform_4, window_bounds = array<i64: 1, 1, 1>}]} {
    %c0 = arith.constant 0 : index
    %c0_0 = arith.constant 0 : index
    %c0_1 = arith.constant 0 : index
    %0 = vector.load %arg4[%c0, %c0_0, %c0_1] : memref<1x16x1xf32, #tpu.memory_space<vmem>>, vector<1x16x1xf32>
    %1 = vector.shape_cast %0 : vector<1x16x1xf32> to vector<16x1xf32>
    %c0_2 = arith.constant 0 : index
    %c0_3 = arith.constant 0 : index
    %c0_4 = arith.constant 0 : index
    %2 = vector.load %arg5[%c0_2, %c0_3, %c0_4] : memref<1x1x128xf32, #tpu.memory_space<vmem>>, vector<1x1x128xf32>
    %3 = vector.shape_cast %2 : vector<1x1x128xf32> to vector<1x128xf32>
    %c0_i32 = arith.constant 0 : i32
    %4 = arith.cmpi eq, %arg1, %c0_i32 : i32
    %5 = arith.extui %4 : i1 to i32
    %c0_i32_5 = arith.constant 0 : i32
    %6 = arith.cmpi ne, %5, %c0_i32_5 : i32
    scf.if %6 {
      %c0_36 = arith.constant 0 : index
      %c0_37 = arith.constant 0 : index
      %c0_38 = arith.constant 0 : index
      %54 = vector.load %arg3[%c0_36, %c0_37, %c0_38] : memref<1x128x32xf32, #tpu.memory_space<vmem>>, vector<1x128x32xf32>
      %55 = vector.shape_cast %54 : vector<1x128x32xf32> to vector<128x32xf32>
      %56 = arith.mulf %55, %55 : vector<128x32xf32>
      %cst_39 = arith.constant 1.000000e+00 : f32
      %57 = vector.broadcast %cst_39 : f32 to vector<1x32xf32>
      %cst_40 = arith.constant dense<0.000000e+00> : vector<1x128xf32>
      %58 = tpu.matmul %57, %56, %cst_40 {dimension_numbers = #tpu.dot_dimension_numbers<[1], [1], [0], [0], [0, 0, 1, 0], [], []>} : vector<1x32xf32>, vector<128x32xf32>, vector<1x128xf32> -> vector<1x128xf32>
      %cst_41 = arith.constant 1.000000e+00 : f32
      %59 = vector.broadcast %cst_41 : f32 to vector<1x128xf32>
      %60 = arith.subf %59, %3 : vector<1x128xf32>
      %cst_42 = arith.constant 1.000000e+30 : f32
      %61 = vector.broadcast %cst_42 : f32 to vector<1x128xf32>
      %62 = arith.mulf %61, %60 : vector<1x128xf32>
      %63 = arith.addf %58, %62 : vector<1x128xf32>
      %c0_43 = arith.constant 0 : index
      %c0_44 = arith.constant 0 : index
      %64 = vector.load %arg7[%c0_43, %c0_44] : memref<1x128xf32, #tpu.memory_space<vmem>>, vector<1x128xf32>
      tpu.vector_store %arg7[%c0_43, %c0_44], %63 {strides = array<i32>} : memref<1x128xf32, #tpu.memory_space<vmem>>, vector<1x128xf32>,
      %cst_45 = arith.constant 3.000000e+38 : f32
      %65 = vector.broadcast %cst_45 : f32 to vector<1x128xf32>
      %c0_46 = arith.constant 0 : index
      %c0_47 = arith.constant 0 : index
      %66 = vector.load %arg8[%c0_46, %c0_47] : memref<1x128xf32, #tpu.memory_space<vmem>>, vector<1x128xf32>
      tpu.vector_store %arg8[%c0_46, %c0_47], %65 {strides = array<i32>} : memref<1x128xf32, #tpu.memory_space<vmem>>, vector<1x128xf32>,
      %cst_48 = arith.constant 0.000000e+00 : f32
      %67 = vector.broadcast %cst_48 : f32 to vector<1x1xf32>
      %c0_49 = arith.constant 0 : index
      %c0_50 = arith.constant 0 : index
      %68 = vector.load %arg9[%c0_49, %c0_50] : memref<1x1xf32, #tpu.memory_space<vmem>>, vector<1x1xf32>
      tpu.vector_store %arg9[%c0_49, %c0_50], %67 {strides = array<i32>} : memref<1x1xf32, #tpu.memory_space<vmem>>, vector<1x1xf32>,
      %cst_51 = arith.constant 0.000000e+00 : f32
      %69 = vector.broadcast %cst_51 : f32 to vector<1x1xf32>
      %c0_52 = arith.constant 0 : index
      %c0_53 = arith.constant 0 : index
      %70 = vector.load %arg10[%c0_52, %c0_53] : memref<1x1xf32, #tpu.memory_space<vmem>>, vector<1x1xf32>
      tpu.vector_store %arg10[%c0_52, %c0_53], %69 {strides = array<i32>} : memref<1x1xf32, #tpu.memory_space<vmem>>, vector<1x1xf32>,
    } else {
    }
    %c0_6 = arith.constant 0 : index
    %c0_7 = arith.constant 0 : index
    %c0_8 = arith.constant 0 : index
    %7 = vector.load %arg2[%c0_6, %c0_7, %c0_8] : memref<1x16x32xf32, #tpu.memory_space<vmem>>, vector<1x16x32xf32>
    %8 = vector.shape_cast %7 : vector<1x16x32xf32> to vector<16x32xf32>
    %9 = arith.mulf %8, %8 : vector<16x32xf32>
    %cst = arith.constant dense<0.000000e+00> : vector<16xf32>
    %10 = vector.multi_reduction <add>, %9, %cst [1] : vector<16x32xf32> to vector<16xf32>
    %11 = vector.shape_cast %10 : vector<16xf32> to vector<16x1xf32>
    %cst_9 = arith.constant 1.000000e+00 : f32
    %12 = vector.broadcast %cst_9 : f32 to vector<16x1xf32>
    %13 = arith.subf %12, %1 : vector<16x1xf32>
    %cst_10 = arith.constant 1.000000e+30 : f32
    %14 = vector.broadcast %cst_10 : f32 to vector<16x1xf32>
    %15 = arith.mulf %14, %13 : vector<16x1xf32>
    %16 = arith.addf %11, %15 : vector<16x1xf32>
    %cst_11 = arith.constant -2.000000e+00 : f32
    %17 = vector.broadcast %cst_11 : f32 to vector<16x32xf32>
    %18 = arith.mulf %8, %17 : vector<16x32xf32>
    %c0_12 = arith.constant 0 : index
    %c0_13 = arith.constant 0 : index
    %c0_14 = arith.constant 0 : index
    %19 = vector.load %arg3[%c0_12, %c0_13, %c0_14] : memref<1x128x32xf32, #tpu.memory_space<vmem>>, vector<1x128x32xf32>
    %20 = vector.shape_cast %19 : vector<1x128x32xf32> to vector<128x32xf32>
    %cst_15 = arith.constant dense<0.000000e+00> : vector<16x128xf32>
    %21 = tpu.matmul %18, %20, %cst_15 {dimension_numbers = #tpu.dot_dimension_numbers<[1], [1], [0], [0], [0, 0, 1, 0], [], []>} : vector<16x32xf32>, vector<128x32xf32>, vector<16x128xf32> -> vector<16x128xf32>
    %22 = vector.broadcast %16 : vector<16x1xf32> to vector<16x128xf32>
    %23 = arith.addf %21, %22 : vector<16x128xf32>
    %c0_16 = arith.constant 0 : index
    %c0_17 = arith.constant 0 : index
    %24 = vector.load %arg7[%c0_16, %c0_17] : memref<1x128xf32, #tpu.memory_space<vmem>>, vector<1x128xf32>
    %25 = vector.broadcast %24 : vector<1x128xf32> to vector<16x128xf32>
    %26 = arith.addf %23, %25 : vector<16x128xf32>
    %cst_18 = arith.constant dense<0x7F800000> : vector<16xf32>
    %27 = vector.multi_reduction <minimumf>, %26, %cst_18 [1] : vector<16x128xf32> to vector<16xf32>
    %28 = vector.shape_cast %27 : vector<16xf32> to vector<16x1xf32>
    %c0_19 = arith.constant 0 : index
    %c0_20 = arith.constant 0 : index
    %29 = vector.load %arg9[%c0_19, %c0_20] : memref<1x1xf32, #tpu.memory_space<vmem>>, vector<1x1xf32>
    %30 = arith.mulf %28, %1 : vector<16x1xf32>
    %31 = vector.shape_cast %30 : vector<16x1xf32> to vector<1x16x1xf32>
    %cst_21 = arith.constant dense<0.000000e+00> : vector<1xf32>
    %32 = vector.multi_reduction <add>, %31, %cst_21 [1, 2] : vector<1x16x1xf32> to vector<1xf32>
    %33 = vector.shape_cast %32 : vector<1xf32> to vector<1x1x1xf32>
    %34 = vector.extract %33[0, 0, 0] : f32 from vector<1x1x1xf32>
    %35 = vector.broadcast %34 : f32 to vector<1x1xf32>
    %36 = arith.addf %29, %35 : vector<1x1xf32>
    %c0_22 = arith.constant 0 : index
    %c0_23 = arith.constant 0 : index
    %37 = vector.load %arg9[%c0_22, %c0_23] : memref<1x1xf32, #tpu.memory_space<vmem>>, vector<1x1xf32>
    tpu.vector_store %arg9[%c0_22, %c0_23], %36 {strides = array<i32>} : memref<1x1xf32, #tpu.memory_space<vmem>>, vector<1x1xf32>,
    %c0_24 = arith.constant 0 : index
    %c0_25 = arith.constant 0 : index
    %38 = vector.load %arg10[%c0_24, %c0_25] : memref<1x1xf32, #tpu.memory_space<vmem>>, vector<1x1xf32>
    %39 = vector.shape_cast %1 : vector<16x1xf32> to vector<1x16x1xf32>
    %cst_26 = arith.constant dense<0.000000e+00> : vector<1xf32>
    %40 = vector.multi_reduction <add>, %39, %cst_26 [1, 2] : vector<1x16x1xf32> to vector<1xf32>
    %41 = vector.shape_cast %40 : vector<1xf32> to vector<1x1x1xf32>
    %42 = vector.extract %41[0, 0, 0] : f32 from vector<1x1x1xf32>
    %43 = vector.broadcast %42 : f32 to vector<1x1xf32>
    %44 = arith.addf %38, %43 : vector<1x1xf32>
    %c0_27 = arith.constant 0 : index
    %c0_28 = arith.constant 0 : index
    %45 = vector.load %arg10[%c0_27, %c0_28] : memref<1x1xf32, #tpu.memory_space<vmem>>, vector<1x1xf32>
    tpu.vector_store %arg10[%c0_27, %c0_28], %44 {strides = array<i32>} : memref<1x1xf32, #tpu.memory_space<vmem>>, vector<1x1xf32>,
    %c0_29 = arith.constant 0 : index
    %c0_30 = arith.constant 0 : index
    %46 = vector.load %arg8[%c0_29, %c0_30] : memref<1x128xf32, #tpu.memory_space<vmem>>, vector<1x128xf32>
    %cst_31 = arith.constant dense<0x7F800000> : vector<128xf32>
    %47 = vector.multi_reduction <minimumf>, %26, %cst_31 [0] : vector<16x128xf32> to vector<128xf32>
    %48 = vector.shape_cast %47 : vector<128xf32> to vector<1x128xf32>
    %49 = arith.minimumf %46, %48 : vector<1x128xf32>
    %c0_32 = arith.constant 0 : index
    %c0_33 = arith.constant 0 : index
    %50 = vector.load %arg8[%c0_32, %c0_33] : memref<1x128xf32, #tpu.memory_space<vmem>>, vector<1x128xf32>
    tpu.vector_store %arg8[%c0_32, %c0_33], %49 {strides = array<i32>} : memref<1x128xf32, #tpu.memory_space<vmem>>, vector<1x128xf32>,
    %c0_i32_34 = arith.constant 0 : i32
    %51 = arith.cmpi eq, %arg1, %c0_i32_34 : i32
    %52 = arith.extui %51 : i1 to i32
    %c0_i32_35 = arith.constant 0 : i32
    %53 = arith.cmpi ne, %52, %c0_i32_35 : i32
    scf.if %53 {
      %54 = vector.shape_cast %3 : vector<1x128xf32> to vector<1x1x128xf32>
      %cst_36 = arith.constant dense<0.000000e+00> : vector<1xf32>
      %55 = vector.multi_reduction <add>, %54, %cst_36 [1, 2] : vector<1x1x128xf32> to vector<1xf32>
      %56 = vector.shape_cast %55 : vector<1xf32> to vector<1x1x1xf32>
      %57 = vector.extract %56[0, 0, 0] : f32 from vector<1x1x1xf32>
      %58 = vector.broadcast %57 : f32 to vector<1x1xf32>
      %c0_37 = arith.constant 0 : index
      %c0_38 = arith.constant 0 : index
      %59 = vector.load %arg8[%c0_37, %c0_38] : memref<1x128xf32, #tpu.memory_space<vmem>>, vector<1x128xf32>
      %60 = arith.mulf %59, %3 : vector<1x128xf32>
      %61 = vector.shape_cast %60 : vector<1x128xf32> to vector<1x1x128xf32>
      %cst_39 = arith.constant dense<0.000000e+00> : vector<1xf32>
      %62 = vector.multi_reduction <add>, %61, %cst_39 [1, 2] : vector<1x1x128xf32> to vector<1xf32>
      %63 = vector.shape_cast %62 : vector<1xf32> to vector<1x1x1xf32>
      %64 = vector.extract %63[0, 0, 0] : f32 from vector<1x1x1xf32>
      %65 = vector.broadcast %64 : f32 to vector<1x1xf32>
      %66 = arith.divf %65, %58 : vector<1x1xf32>
      %c0_40 = arith.constant 0 : index
      %c0_41 = arith.constant 0 : index
      %67 = vector.load %arg9[%c0_40, %c0_41] : memref<1x1xf32, #tpu.memory_space<vmem>>, vector<1x1xf32>
      %c0_42 = arith.constant 0 : index
      %c0_43 = arith.constant 0 : index
      %68 = vector.load %arg10[%c0_42, %c0_43] : memref<1x1xf32, #tpu.memory_space<vmem>>, vector<1x1xf32>
      %69 = arith.divf %67, %68 : vector<1x1xf32>
      %70 = arith.addf %69, %66 : vector<1x1xf32>
      %c0_44 = arith.constant 0 : index
      %c0_45 = arith.constant 0 : index
      %c0_46 = arith.constant 0 : index
      %71 = vector.load %arg6[%c0_44, %c0_45, %c0_46] : memref<1x1x1xf32, #tpu.memory_space<vmem>>, vector<1x1x1xf32>
      %72 = vector.shape_cast %71 : vector<1x1x1xf32> to vector<1x1xf32>
      %73 = vector.shape_cast %70 : vector<1x1xf32> to vector<1x1x1xf32>
      tpu.vector_store %arg6[%c0_44, %c0_45, %c0_46], %73 {strides = array<i32>} : memref<1x1x1xf32, #tpu.memory_space<vmem>>, vector<1x1x1xf32>,
    } else {
    }
    return
  }
  func.func @transform_0(%arg0: i32, %arg1: i32) -> (i32, i32, i32) {
    %c0_i32 = arith.constant 0 : i32
    %c0_i32_0 = arith.constant 0 : i32
    return %arg0, %arg1, %c0_i32 : i32, i32, i32
  }
  func.func @transform_1(%arg0: i32, %arg1: i32) -> (i32, i32, i32) {
    %c0_i32 = arith.constant 0 : i32
    %c0_i32_0 = arith.constant 0 : i32
    %c0_i32_1 = arith.constant 0 : i32
    return %arg0, %c0_i32, %c0_i32_0 : i32, i32, i32
  }
  func.func @transform_2(%arg0: i32, %arg1: i32) -> (i32, i32, i32) {
    %c0_i32 = arith.constant 0 : i32
    %c0_i32_0 = arith.constant 0 : i32
    return %arg0, %arg1, %c0_i32 : i32, i32, i32
  }
  func.func @transform_3(%arg0: i32, %arg1: i32) -> (i32, i32, i32) {
    %c0_i32 = arith.constant 0 : i32
    %c0_i32_0 = arith.constant 0 : i32
    %c0_i32_1 = arith.constant 0 : i32
    return %arg0, %c0_i32, %c0_i32_0 : i32, i32, i32
  }
  func.func @transform_4(%arg0: i32, %arg1: i32) -> (i32, i32, i32) {
    %c0_i32 = arith.constant 0 : i32
    %c0_i32_0 = arith.constant 0 : i32
    %c0_i32_1 = arith.constant 0 : i32
    return %arg0, %c0_i32, %c0_i32_0 : i32, i32, i32
  }
}

</mosaic_0001>

<llo_original>
// kernel: tpu_custom_call.1
$region0: #{tpu_custom_call.1}
  #allocation0 [shape = 'u32[]', space=smem, size = 0x4, offset = 0x4, fixed_abs, tag = 'smem constant byte address 0x4 - core index']
  #allocation1 [shape = 'u32[144,128]{1,0:T(1,128)}', space=vmem, size = 0x12000, scoped, tag = 'internal scratch']
  #allocation2 [shape = 'f32[1,128]{1,0:T(1,128)}', space=vmem, size = 0x200, scoped, tag = 'scratch operand']
  #allocation3 [shape = 'f32[1,128]{1,0:T(1,128)}', space=vmem, size = 0x200, scoped, tag = 'scratch operand']
  #allocation4 [shape = 'f32[1,1]{1,0:T(1,128)}', space=vmem, size = 0x200, scoped, tag = 'scratch operand']
  #allocation5 [shape = 'f32[1,1]{1,0:T(1,128)}', space=vmem, size = 0x200, scoped, tag = 'scratch operand']
  %s0 = inlined_call_operand.vmem [shape: f32[2,16,32], index: 0, kind: input, shape index: {}]
  %s1 = inlined_call_operand.vmem [shape: f32[2,128,32], index: 1, kind: input, shape index: {}]
  %s2 = inlined_call_operand.vmem [shape: f32[2,16,1], index: 2, kind: input, shape index: {}]
  %s3 = inlined_call_operand.vmem [shape: f32[2,1,128], index: 3, kind: input, shape index: {}]
  %s4 = inlined_call_operand.vmem [shape: f32[2,1,1], index: 4, kind: output, shape index: {}]
  %s5 = sld [smem:[#allocation0]]
  $region57: #{tpu_custom_call.1} parent=0
    _
  %s7 = ssub.s32 1, %s5
  %s8 = scalar_select 0, %s7, %s5
  loop: start=0, step=1, limit=4
  $region2: #{tpu_custom_call.1} parent=0 // loop_pre_header
    _
  $region3: #{tpu_custom_call.1} parent=0 // loop_header
    %s10 = sphi 0, %s14
    %p11 = scmp.ge.s32.totalorder %s10, 4
    %s17 = sphi 0, %s29
    %s18 = sphi 0, %s25
    %s19 = sphi 0, %s17
    %s20 = sphi 0, %s18
    %s21 = sphi 0, %s19
    %s22 = sphi 0, %s20
    %s34 = sphi 0, %s36
    %s37 = sphi 0, %s34
    %s38 = sphi 0, %s37
    %s54 = sphi 0, %s38
    %s60 = sphi 0, %s62
    %s63 = sphi 0, %s60
    %s64 = sphi 0, %s63
    %s80 = sphi 0, %s64
    %s88 = sphi 0, %s90
    %s91 = sphi 0, %s88
    %s92 = sphi 0, %s91
    %s108 = sphi 0, %s92
    %s114 = sphi 0, %s116
    %s117 = sphi 0, %s114
    %s118 = sphi 0, %s117
    %s134 = sphi 0, %s118
    %s140 = sphi 0, %s142
    %s143 = sphi 0, %s140
    %s144 = sphi 0, %s143
    %s160 = sphi 0, %s144
  $region4: #{tpu_custom_call.1} parent=0 // loop_header_branch
    %13 = sbr.rel (%p11) target = $region8
  $region5: #{tpu_custom_call.1} parent=0 // loop_body
    %s15 = ssub.s32 %s10, 1
    %s16 = ssub.s32 %s10, 2
    %s23 = sadd.s32 1, %s18
    %p24 = scmp.ge.s32.totalorder %s23, 1
    %s25 = scalar_select %p24, 0, %s23
    %s26 = sadd.s32 1, %s17
    %s27 = scalar_select %p24, %s26, %s17
    %p28 = scmp.ge.s32.totalorder %s27, 2
    %s29 = scalar_select %p28, 0, %s27
    %s30 = ssub.s32 %s17, %s29
    %s31 = ssub.s32 %s18, %s25
    %s32 = sor.u32 %s30, %s31
    %p33 = scmp.eq.s32.totalorder %s32, 0
    %s35 = sadd.s32 %s34, 1
    %s36 = scalar_select %p33, %s34, %s35
    %p39 = pneg %p33
    %p40 = scmp.eq.s32.totalorder %s10, 1
    %p41 = por %p39, %p40
    %p42 = scmp.ne.s32.totalorder %s34, %s37
    %p43 = scmp.eq.s32.totalorder %s10, 0
    %p44 = por %p42, %p43
    %p45 = scmp.ne.s32.totalorder %s34, %s37
    %p46 = scmp.eq.s32.totalorder %s15, 1
    %p47 = por %p45, %p46
    %p48 = scmp.ne.s32.totalorder %s37, %s38
    %p49 = scmp.eq.s32.totalorder %s15, 0
    %p50 = por %p48, %p49
    %p51 = scmp.ne.s32.totalorder %s37, %s38
    %p52 = scmp.eq.s32.totalorder %s16, 1
    %p53 = por %p51, %p52
    %p55 = scmp.ne.s32.totalorder %s38, %s54
    %p56 = scmp.eq.s32.totalorder %s16, 0
    %p57 = por %p55, %p56
    %s58 = ssub.s32 %s17, %s29
    %p59 = scmp.eq.s32.totalorder %s58, 0
    %s61 = sadd.s32 %s60, 1
    %s62 = scalar_select %p59, %s60, %s61
    %p65 = pneg %p59
    %p66 = scmp.eq.s32.totalorder %s10, 1
    %p67 = por %p65, %p66
    %p68 = scmp.ne.s32.totalorder %s60, %s63
    %p69 = scmp.eq.s32.totalorder %s10, 0
    %p70 = por %p68, %p69
    %p71 = scmp.ne.s32.totalorder %s60, %s63
    %p72 = scmp.eq.s32.totalorder %s15, 1
    %p73 = por %p71, %p72
    %p74 = scmp.ne.s32.totalorder %s63, %s64
    %p75 = scmp.eq.s32.totalorder %s15, 0
    %p76 = por %p74, %p75
    %p77 = scmp.ne.s32.totalorder %s63, %s64
    %p78 = scmp.eq.s32.totalorder %s16, 1
    %p79 = por %p77, %p78
    %p81 = scmp.ne.s32.totalorder %s64, %s80
    %p82 = scmp.eq.s32.totalorder %s16, 0
    %p83 = por %p81, %p82
    %s84 = ssub.s32 %s17, %s29
    %s85 = ssub.s32 %s18, %s25
    %s86 = sor.u32 %s84, %s85
    %p87 = scmp.eq.s32.totalorder %s86, 0
    %s89 = sadd.s32 %s88, 1
    %s90 = scalar_select %p87, %s88, %s89
    %p93 = pneg %p87
    %p94 = scmp.eq.s32.totalorder %s10, 1
    %p95 = por %p93, %p94
    %p96 = scmp.ne.s32.totalorder %s88, %s91
    %p97 = scmp.eq.s32.totalorder %s10, 0
    %p98 = por %p96, %p97
    %p99 = scmp.ne.s32.totalorder %s88, %s91
    %p100 = scmp.eq.s32.totalorder %s15, 1
    %p101 = por %p99, %p100
    %p102 = scmp.ne.s32.totalorder %s91, %s92
    %p103 = scmp.eq.s32.totalorder %s15, 0
    %p104 = por %p102, %p103
    %p105 = scmp.ne.s32.totalorder %s91, %s92
    %p106 = scmp.eq.s32.totalorder %s16, 1
    %p107 = por %p105, %p106
    %p109 = scmp.ne.s32.totalorder %s92, %s108
    %p110 = scmp.eq.s32.totalorder %s16, 0
    %p111 = por %p109, %p110
    %s112 = ssub.s32 %s17, %s29
    %p113 = scmp.eq.s32.totalorder %s112, 0
    %s115 = sadd.s32 %s114, 1
    %s116 = scalar_select %p113, %s114, %s115
    %p119 = pneg %p113
    %p120 = scmp.eq.s32.totalorder %s10, 1
    %p121 = por %p119, %p120
    %p122 = scmp.ne.s32.totalorder %s114, %s117
    %p123 = scmp.eq.s32.totalorder %s10, 0
    %p124 = por %p122, %p123
    %p125 = scmp.ne.s32.totalorder %s114, %s117
    %p126 = scmp.eq.s32.totalorder %s15, 1
    %p127 = por %p125, %p126
    %p128 = scmp.ne.s32.totalorder %s117, %s118
    %p129 = scmp.eq.s32.totalorder %s15, 0
    %p130 = por %p128, %p129
    %p131 = scmp.ne.s32.totalorder %s117, %s118
    %p132 = scmp.eq.s32.totalorder %s16, 1
    %p133 = por %p131, %p132
    %p135 = scmp.ne.s32.totalorder %s118, %s134
    %p136 = scmp.eq.s32.totalorder %s16, 0
    %p137 = por %p135, %p136
    %s138 = ssub.s32 %s17, %s29
    %p139 = scmp.eq.s32.totalorder %s138, 0
    %s141 = sadd.s32 %s140, 1
    %s142 = scalar_select %p139, %s140, %s141
    %p145 = pneg %p139
    %p146 = scmp.eq.s32.totalorder %s10, 1
    %p147 = por %p145, %p146
    %p148 = scmp.ne.s32.totalorder %s140, %s143
    %p149 = scmp.eq.s32.totalorder %s10, 0
    %p150 = por %p148, %p149
    %p151 = scmp.ne.s32.totalorder %s140, %s143
    %p152 = scmp.eq.s32.totalorder %s15, 1
    %p153 = por %p151, %p152
    %p154 = scmp.ne.s32.totalorder %s143, %s144
    %p155 = scmp.eq.s32.totalorder %s15, 0
    %p156 = por %p154, %p155
    %p157 = scmp.ne.s32.totalorder %s143, %s144
    %p158 = scmp.eq.s32.totalorder %s16, 1
    %p159 = por %p157, %p158
    %p161 = scmp.ne.s32.totalorder %s144, %s160
    %p162 = scmp.eq.s32.totalorder %s16, 0
    %p163 = por %p161, %p162
    %p164 = scmp.le.s32.totalorder 1, %s10
    %p165 = scmp.lt.s32.totalorder %s10, 3
    %p166 = pnand %p164, %p165
    %p167 = pneg %p166
    // Predicated region
    $region9: #{tpu_custom_call.1} parent=5 // pred_check
      _
    $region10: #{tpu_custom_call.1} parent=5 // pred_check_branch
      %169 = sbr.rel (%p166) target = $region12
    $region11: #{tpu_custom_call.1} parent=5 // pred_region
      %s170 = ssub.s32 %s10, 1
    $region12: #{tpu_custom_call.1} parent=5 // pred_fallthru
      _
    %p171 = scmp.lt.s32.totalorder %s10, 2
    // Predicated region
    $region13: #{tpu_custom_call.1} parent=5 // pred_check
      %p172 = pneg %p171
    $region14: #{tpu_custom_call.1} parent=5 // pred_check_branch
      %174 = sbr.rel (%p172) target = $region16
    $region15: #{tpu_custom_call.1} parent=5 // pred_region
      // Predicated region
      $region17: #{tpu_custom_call.1} parent=15 // pred_check
        %p175 = pneg %p44
      $region18: #{tpu_custom_call.1} parent=15 // pred_check_branch
        %177 = sbr.rel (%p175) target = $region20
      $region19: #{tpu_custom_call.1} parent=15 // pred_region
        %s178 = smul.u32 2, %s18
        %p179 = scmp.lt.s32.totalorder %s17, 1
        %s180 = scalar_select %p179, %s17, 1
        %p181 = scmp.lt.s32.totalorder %s178, 1
        %s182 = scalar_select %p181, %s178, 1
        %s183 = smul.addr %s180, 2
        %s184 = sadd.s32 %s182, %s183
        %s185 = smul.addr %s184, 8
        %s186 = scalar_lea.vmem %s0, %s185
        %s187 = smul.u32 2, %s18
      $region20: #{tpu_custom_call.1} parent=15 // pred_fallthru
        _
      // Predicated region
      $region21: #{tpu_custom_call.1} parent=15 // pred_check
        %p188 = pneg %p70
      $region22: #{tpu_custom_call.1} parent=15 // pred_check_branch
        %190 = sbr.rel (%p188) target = $region24
      $region23: #{tpu_custom_call.1} parent=15 // pred_region
        %p191 = scmp.lt.s32.totalorder %s17, 1
        %s192 = scalar_select %p191, %s17, 1
        %s193 = smul.addr %s192, 16
        %s194 = smul.addr %s193, 8
        %s195 = scalar_lea.vmem %s1, %s194
      $region24: #{tpu_custom_call.1} parent=15 // pred_fallthru
        _
      // Predicated region
      $region25: #{tpu_custom_call.1} parent=15 // pred_check
        %p196 = pneg %p98
      $region26: #{tpu_custom_call.1} parent=15 // pred_check_branch
        %198 = sbr.rel (%p196) target = $region28
      $region27: #{tpu_custom_call.1} parent=15 // pred_region
        %s199 = smul.u32 2, %s18
        %p200 = scmp.lt.s32.totalorder %s17, 1
        %s201 = scalar_select %p200, %s17, 1
        %p202 = scmp.lt.s32.totalorder %s199, 1
        %s203 = scalar_select %p202, %s199, 1
        %s204 = smul.addr %s201, 2
        %s205 = sadd.s32 %s203, %s204
        %s206 = smul.addr %s205, 8
        %s207 = scalar_lea.vmem %s2, %s206
        %s208 = smul.u32 2, %s18
      $region28: #{tpu_custom_call.1} parent=15 // pred_fallthru
        _
      // Predicated region
      $region29: #{tpu_custom_call.1} parent=15 // pred_check
        %p209 = pneg %p124
      $region30: #{tpu_custom_call.1} parent=15 // pred_check_branch
        %211 = sbr.rel (%p209) target = $region32
      $region31: #{tpu_custom_call.1} parent=15 // pred_region
        %p212 = scmp.lt.s32.totalorder %s17, 1
        %s213 = scalar_select %p212, %s17, 1
        %s214 = scalar_lea.vmem %s3, %s213
      $region32: #{tpu_custom_call.1} parent=15 // pred_fallthru
        _
    $region16: #{tpu_custom_call.1} parent=5 // pred_fallthru
      _
    %p215 = scmp.le.s32.totalorder 1, %s10
    %p216 = scmp.lt.s32.totalorder %s10, 3
    %p217 = pnand %p215, %p216
    %p218 = pneg %p217
    // Predicated region
    $region33: #{tpu_custom_call.1} parent=5 // pred_check
      _
    $region34: #{tpu_custom_call.1} parent=5 // pred_check_branch
      %220 = sbr.rel (%p217) target = $region36
    $region35: #{tpu_custom_call.1} parent=5 // pred_region
      %s221 = ssub.s32 %s10, 1
      %s222 = smul.u32 2, %s20
      %p223 = scmp.lt.s32.totalorder %s19, 1
      %s224 = scalar_select %p223, %s19, 1
      %p225 = scmp.lt.s32.totalorder %s222, 1
      %s226 = scalar_select %p225, %s222, 1
      %s227 = smul.addr %s224, 2
      %s228 = sadd.s32 %s226, %s227
      %s229 = smul.addr %s228, 8
      %s230 = scalar_lea.vmem %s0, %s229
      %p231 = pneg %p50
      %p232 = pneg %p47
      %p233 = scmp.lt.s32.totalorder %s19, 1
      %s234 = scalar_select %p233, %s19, 1
      %s235 = smul.addr %s234, 16
      %s236 = smul.addr %s235, 8
      %s237 = scalar_lea.vmem %s1, %s236
      %p238 = pneg %p76
      %p239 = pneg %p73
      %s240 = smul.u32 2, %s20
      %p241 = scmp.lt.s32.totalorder %s19, 1
      %s242 = scalar_select %p241, %s19, 1
      %p243 = scmp.lt.s32.totalorder %s240, 1
      %s244 = scalar_select %p243, %s240, 1
      %s245 = smul.addr %s242, 2
      %s246 = sadd.s32 %s244, %s245
      %s247 = smul.addr %s246, 8
      %s248 = scalar_lea.vmem %s2, %s247
      %p249 = pneg %p104
      %p250 = pneg %p101
      %p251 = scmp.lt.s32.totalorder %s19, 1
      %s252 = scalar_select %p251, %s19, 1
      %s253 = scalar_lea.vmem %s3, %s252
      %p254 = pneg %p130
      %p255 = pneg %p127
      %p256 = pneg %p156
      %p257 = pneg %p153
      %p258 = scmp.lt.s32.totalorder %s19, 1
      %s259 = scalar_select %p258, %s19, 1
      %s260 = scalar_lea.vmem %s4, %s259
      %s261 = smul.u32 2, %s20
      %p262 = scmp.lt.s32.totalorder %s19, 1
      %s263 = scalar_select %p262, %s19, 1
      %p264 = scmp.lt.s32.totalorder %s261, 1
      %s265 = scalar_select %p264, %s261, 1
      %s266 = smul.addr %s263, 2
      %s267 = sadd.s32 %s265, %s266
      %s268 = smul.addr %s267, 8
      %s269 = scalar_lea.vmem %s0, %s268
      %s270 = smul.u32 2, %s20
      %p271 = scmp.lt.s32.totalorder %s19, 1
      %s272 = scalar_select %p271, %s19, 1
      %s273 = smul.addr %s272, 16
      %s274 = smul.addr %s273, 8
      %s275 = scalar_lea.vmem %s1, %s274
      %s276 = smul.u32 2, %s20
      %p277 = scmp.lt.s32.totalorder %s19, 1
      %s278 = scalar_select %p277, %s19, 1
      %p279 = scmp.lt.s32.totalorder %s276, 1
      %s280 = scalar_select %p279, %s276, 1
      %s281 = smul.addr %s278, 2
      %s282 = sadd.s32 %s280, %s281
      %s283 = smul.addr %s282, 8
      %s284 = scalar_lea.vmem %s2, %s283
      %s285 = smul.u32 2, %s20
      %p286 = scmp.lt.s32.totalorder %s19, 1
      %s287 = scalar_select %p286, %s19, 1
      %s288 = scalar_lea.vmem %s3, %s287
      %p289 = scmp.lt.s32.totalorder %s19, 1
      %s290 = scalar_select %p289, %s19, 1
      %s291 = scalar_lea.vmem %s4, %s290
      %v292 = vld [vmem:[%s284] sm:$0xff]
      %v293 = vld [vmem:[%s284 + $0x8] sm:$0xff]
      %v294 = vld [vmem:[%s288] sm:$0x1]
      %p295 = scmp.eq.s32.totalorder %s20, 0
      // Predicated region
      $region37: #{tpu_custom_call.1} parent=35 // pred_check
        %p296 = pneg %p295
      $region38: #{tpu_custom_call.1} parent=35 // pred_check_branch
        %298 = sbr.rel (%p296) target = $region40
      $region39: #{tpu_custom_call.1} parent=35 // pred_region
        %v299 = vld [vmem:[%s275] sm:$0xff]
        %v300 = vld [vmem:[%s275 + $0x8] sm:$0xff]
        %v301 = vld [vmem:[%s275 + $0x10] sm:$0xff]
        %v302 = vld [vmem:[%s275 + $0x18] sm:$0xff]
        %v303 = vld [vmem:[%s275 + $0x20] sm:$0xff]
        %v304 = vld [vmem:[%s275 + $0x28] sm:$0xff]
        %v305 = vld [vmem:[%s275 + $0x30] sm:$0xff]
        %v306 = vld [vmem:[%s275 + $0x38] sm:$0xff]
        %v307 = vld [vmem:[%s275 + $0x40] sm:$0xff]
        %v308 = vld [vmem:[%s275 + $0x48] sm:$0xff]
        %v309 = vld [vmem:[%s275 + $0x50] sm:$0xff]
        %v310 = vld [vmem:[%s275 + $0x58] sm:$0xff]
        %v311 = vld [vmem:[%s275 + $0x60] sm:$0xff]
        %v312 = vld [vmem:[%s275 + $0x68] sm:$0xff]
        %v313 = vld [vmem:[%s275 + $0x70] sm:$0xff]
        %v314 = vld [vmem:[%s275 + $0x78] sm:$0xff]
        %v315 = vmul.f32 %v299, %v299
        %v316 = vmul.f32 %v300, %v300
        %v317 = vmul.f32 %v301, %v301
        %v318 = vmul.f32 %v302, %v302
        %v319 = vmul.f32 %v303, %v303
        %v320 = vmul.f32 %v304, %v304
        %v321 = vmul.f32 %v305, %v305
        %v322 = vmul.f32 %v306, %v306
        %v323 = vmul.f32 %v307, %v307
        %v324 = vmul.f32 %v308, %v308
        %v325 = vmul.f32 %v309, %v309
        %v326 = vmul.f32 %v310, %v310
        %v327 = vmul.f32 %v311, %v311
        %v328 = vmul.f32 %v312, %v312
        %v329 = vmul.f32 %v313, %v313
        %v330 = vmul.f32 %v314, %v314
        %v331 = vsub.f32 1.0, %v294
        %v332 = vmul.f32 %v331, 1e+30
        %vm333 = vcmask 261120
        %v335 = vsel %vm333, 1.0, 0
        %v338 = vsel %vm333, %v315, 0
        %v341 = vsel %vm333, %v316, 0
        %v344 = vsel %vm333, %v317, 0
        %v347 = vsel %vm333, %v318, 0
        %v350 = vsel %vm333, %v319, 0
        %v353 = vsel %vm333, %v320, 0
        %v356 = vsel %vm333, %v321, 0
        %v359 = vsel %vm333, %v322, 0
        %v362 = vsel %vm333, %v323, 0
        %v365 = vsel %vm333, %v324, 0
        %v368 = vsel %vm333, %v325, 0
        %v371 = vsel %vm333, %v326, 0
        %v374 = vsel %vm333, %v327, 0
        %v377 = vsel %vm333, %v328, 0
        %v380 = vsel %vm333, %v329, 0
        %v383 = vsel %vm333, %v330, 0
        %385 = vmatprep.subr.mxu0 0.0
        %386 = vmatpush1.xpose.msra.mxu0 %v338
        %387 = vmatprep.subr.mxu0 0.0
        %388 = vmatpush1.xpose.msra.mxu0 %v341
        %389 = vmatprep.subr.mxu0 0.0
        %390 = vmatpush1.xpose.msra.mxu0 %v344
        %391 = vmatprep.subr.mxu0 0.0
        %392 = vmatpush1.xpose.msra.mxu0 %v347
        %393 = vmatprep.subr.mxu0 0.0
        %394 = vmatpush1.xpose.msra.mxu0 %v350
        %395 = vmatprep.subr.mxu0 0.0
        %396 = vmatpush1.xpose.msra.mxu0 %v353
        %397 = vmatprep.subr.mxu0 0.0
        %398 = vmatpush1.xpose.msra.mxu0 %v356
        %399 = vmatprep.subr.mxu0 0.0
        %400 = vmatpush1.xpose.msra.mxu0 %v359
        %401 = vmatprep.subr.mxu0 0.0
        %402 = vmatpush1.xpose.msra.mxu0 %v362
        %403 = vmatprep.subr.mxu0 0.0
        %404 = vmatpush1.xpose.msra.mxu0 %v365
        %405 = vmatprep.subr.mxu0 0.0
        %406 = vmatpush1.xpose.msra.mxu0 %v368
        %407 = vmatprep.subr.mxu0 0.0
        %408 = vmatpush1.xpose.msra.mxu0 %v371
        %409 = vmatprep.subr.mxu0 0.0
        %410 = vmatpush1.xpose.msra.mxu0 %v374
        %411 = vmatprep.subr.mxu0 0.0
        %412 = vmatpush1.xpose.msra.mxu0 %v377
        %413 = vmatprep.subr.mxu0 0.0
        %414 = vmatpush1.xpose.msra.mxu0 %v380
        %415 = vmatprep.subr.mxu0 0.0
        %416 = vmatpush1.xpose.msra.mxu0 %v383
        %417 = vmatprep.subr.mxu0 0.0
        %418 = vmatpush1.xpose.msra.mxu0 0.0
        %419 = vmatprep.subr.mxu0 0.0
        %420 = vmatpush1.xpose.msra.mxu0 0.0
        %421 = vmatprep.subr.mxu0 0.0
        %422 = vmatpush1.xpose.msra.mxu0 0.0
        %423 = vmatprep.subr.mxu0 0.0
        %424 = vmatpush1.xpose.msra.mxu0 0.0
        %425 = vmatprep.subr.mxu0 0.0
        %426 = vmatpush1.xpose.msra.mxu0 0.0
        %427 = vmatprep.subr.mxu0 0.0
        %428 = vmatpush1.xpose.msra.mxu0 0.0
        %429 = vmatprep.subr.mxu0 0.0
        %430 = vmatpush1.xpose.msra.mxu0 0.0
        %431 = vmatprep.subr.mxu0 0.0
        %432 = vmatpush1.xpose.msra.mxu0 0.0
        %433 = vmatprep.subr.mxu0 0.0
        %434 = vmatpush1.xpose.msra.mxu0 0.0
        %435 = vmatprep.subr.mxu0 0.0
        %436 = vmatpush1.xpose.msra.mxu0 0.0
        %437 = vmatprep.subr.mxu0 0.0
        %438 = vmatpush1.xpose.msra.mxu0 0.0
        %439 = vmatprep.subr.mxu0 0.0
        %440 = vmatpush1.xpose.msra.mxu0 0.0
        %441 = vmatprep.subr.mxu0 0.0
        %442 = vmatpush1.xpose.msra.mxu0 0.0
        %443 = vmatprep.subr.mxu0 0.0
        %444 = vmatpush1.xpose.msra.mxu0 0.0
        %445 = vmatprep.subr.mxu0 0.0
        %446 = vmatpush1.xpose.msra.mxu0 0.0
        %447 = vmatprep.subr.mxu0 0.0
        %448 = vmatpush1.xpose.msra.mxu0 0.0
        %449 = vmatprep.mubr.f32.mxu0 0.0
        %450 = vmatmul.mubr.f32.gmra.mrb[0].mxu0 %v335
        %v451 = vpop.f32.mrb[0].mxu0
        %v452 = vadd.f32 %v332, %v451
        %v453 = vpop.f32.mrb[0].mxu0
        %454 = vdwg.mxu0
        %455 = vst [vmem:[#allocation2] sm:$0x1] %v452
        %456 = vst [vmem:[#allocation3] sm:$0x1] 3e+38
        %vm457 = vcmask 0
        %458 = vst.msk [vmem:[#allocation4] sm:$0x1] %vm457, 0.0
        %459 = vst.msk [vmem:[#allocation5] sm:$0x1] %vm457, 0.0
      $region40: #{tpu_custom_call.1} parent=35 // pred_fallthru
        _
      %v460 = vld [vmem:[%s269] sm:$0xff]
      %v461 = vld [vmem:[%s269 + $0x8] sm:$0xff]
      %v462 = vmul.f32 %v460, %v460
      %v463 = vmul.f32 %v461, %v461
      %vm464 = vcmask 261120
      %v465 = vsel %vm464, %v462, 0.0
      %466 = vadd.xlane.f32.xlu0 %v465
      %v467 = vpop.xlane.xlu0 %466
      %v468 = vsel %vm464, %v463, 0.0
      %469 = vadd.xlane.f32.xlu0 %v468
      %v470 = vpop.xlane.xlu0 %469
      %v471 = vsub.f32 1.0, %v292
      %v472 = vsub.f32 1.0, %v293
      %v473 = vmul.f32 %v471, 1e+30
      %v474 = vmul.f32 %v472, 1e+30
      %v475 = vadd.f32 %v467, %v473
      %v476 = vadd.f32 %v470, %v474
      %v477 = vmul.f32 %v460, -2.0
      %v478 = vmul.f32 %v461, -2.0
      %v479 = vld [vmem:[%s275] sm:$0xff]
      %v480 = vld [vmem:[%s275 + $0x8] sm:$0xff]
      %v481 = vld [vmem:[%s275 + $0x10] sm:$0xff]
      %v482 = vld [vmem:[%s275 + $0x18] sm:$0xff]
      %v483 = vld [vmem:[%s275 + $0x20] sm:$0xff]
      %v484 = vld [vmem:[%s275 + $0x28] sm:$0xff]
      %v485 = vld [vmem:[%s275 + $0x30] sm:$0xff]
      %v486 = vld [vmem:[%s275 + $0x38] sm:$0xff]
      %v487 = vld [vmem:[%s275 + $0x40] sm:$0xff]
      %v488 = vld [vmem:[%s275 + $0x48] sm:$0xff]
      %v489 = vld [vmem:[%s275 + $0x50] sm:$0xff]
      %v490 = vld [vmem:[%s275 + $0x58] sm:$0xff]
      %v491 = vld [vmem:[%s275 + $0x60] sm:$0xff]
      %v492 = vld [vmem:[%s275 + $0x68] sm:$0xff]
      %v493 = vld [vmem:[%s275 + $0x70] sm:$0xff]
      %v494 = vld [vmem:[%s275 + $0x78] sm:$0xff]
      %496 = vset.pattern.permute.xlu0 0
      %497 = vperm.xlu0 %496, %v475
      %v498 = vpop.permute.xlu0 %497
      %501 = vset.pattern.permute.xlu0 0
      %502 = vperm.xlu0 %501, %v476
      %v503 = vpop.permute.xlu0 %502
      %v506 = vsel %vm464, %v477, 0
      %v509 = vsel %vm464, %v478, 0
      %v512 = vsel %vm464, %v479, 0
      %v515 = vsel %vm464, %v480, 0
      %v518 = vsel %vm464, %v481, 0
      %v521 = vsel %vm464, %v482, 0
      %v524 = vsel %vm464, %v483, 0
      %v527 = vsel %vm464, %v484, 0
      %v530 = vsel %vm464, %v485, 0
      %v533 = vsel %vm464, %v486, 0
      %v536 = vsel %vm464, %v487, 0
      %v539 = vsel %vm464, %v488, 0
      %v542 = vsel %vm464, %v489, 0
      %v545 = vsel %vm464, %v490, 0
      %v548 = vsel %vm464, %v491, 0
      %v551 = vsel %vm464, %v492, 0
      %v554 = vsel %vm464, %v493, 0
      %v557 = vsel %vm464, %v494, 0
      %559 = vmatprep.subr.mxu0 0.0
      %560 = vmatpush1.xpose.msra.mxu0 %v512
      %561 = vmatprep.subr.mxu0 0.0
      %562 = vmatpush1.xpose.msra.mxu0 %v515
      %563 = vmatprep.subr.mxu0 0.0
      %564 = vmatpush1.xpose.msra.mxu0 %v518
      %565 = vmatprep.subr.mxu0 0.0
      %566 = vmatpush1.xpose.msra.mxu0 %v521
      %567 = vmatprep.subr.mxu0 0.0
      %568 = vmatpush1.xpose.msra.mxu0 %v524
      %569 = vmatprep.subr.mxu0 0.0
      %570 = vmatpush1.xpose.msra.mxu0 %v527
      %571 = vmatprep.subr.mxu0 0.0
      %572 = vmatpush1.xpose.msra.mxu0 %v530
      %573 = vmatprep.subr.mxu0 0.0
      %574 = vmatpush1.xpose.msra.mxu0 %v533
      %575 = vmatprep.subr.mxu0 0.0
      %576 = vmatpush1.xpose.msra.mxu0 %v536
      %577 = vmatprep.subr.mxu0 0.0
      %578 = vmatpush1.xpose.msra.mxu0 %v539
      %579 = vmatprep.subr.mxu0 0.0
      %580 = vmatpush1.xpose.msra.mxu0 %v542
      %581 = vmatprep.subr.mxu0 0.0
      %582 = vmatpush1.xpose.msra.mxu0 %v545
      %583 = vmatprep.subr.mxu0 0.0
      %584 = vmatpush1.xpose.msra.mxu0 %v548
      %585 = vmatprep.subr.mxu0 0.0
      %586 = vmatpush1.xpose.msra.mxu0 %v551
      %587 = vmatprep.subr.mxu0 0.0
      %588 = vmatpush1.xpose.msra.mxu0 %v554
      %589 = vmatprep.subr.mxu0 0.0
      %590 = vmatpush1.xpose.msra.mxu0 %v557
      %591 = vmatprep.subr.mxu0 0.0
      %592 = vmatpush1.xpose.msra.mxu0 0.0
      %593 = vmatprep.subr.mxu0 0.0
      %594 = vmatpush1.xpose.msra.mxu0 0.0
      %595 = vmatprep.subr.mxu0 0.0
      %596 = vmatpush1.xpose.msra.mxu0 0.0
      %597 = vmatprep.subr.mxu0 0.0
      %598 = vmatpush1.xpose.msra.mxu0 0.0
      %599 = vmatprep.subr.mxu0 0.0
      %600 = vmatpush1.xpose.msra.mxu0 0.0
      %601 = vmatprep.subr.mxu0 0.0
      %602 = vmatpush1.xpose.msra.mxu0 0.0
      %603 = vmatprep.subr.mxu0 0.0
      %604 = vmatpush1.xpose.msra.mxu0 0.0
      %605 = vmatprep.subr.mxu0 0.0
      %606 = vmatpush1.xpose.msra.mxu0 0.0
      %607 = vmatprep.subr.mxu0 0.0
      %608 = vmatpush1.xpose.msra.mxu0 0.0
      %609 = vmatprep.subr.mxu0 0.0
      %610 = vmatpush1.xpose.msra.mxu0 0.0
      %611 = vmatprep.subr.mxu0 0.0
      %612 = vmatpush1.xpose.msra.mxu0 0.0
      %613 = vmatprep.subr.mxu0 0.0
      %614 = vmatpush1.xpose.msra.mxu0 0.0
      %615 = vmatprep.subr.mxu0 0.0
      %616 = vmatpush1.xpose.msra.mxu0 0.0
      %617 = vmatprep.subr.mxu0 0.0
      %618 = vmatpush1.xpose.msra.mxu0 0.0
      %619 = vmatprep.subr.mxu0 0.0
      %620 = vmatpush1.xpose.msra.mxu0 0.0
      %621 = vmatprep.subr.mxu0 0.0
      %622 = vmatpush1.xpose.msra.mxu0 0.0
      %623 = vmatprep.mubr.f32.mxu0 0.0
      %624 = vmatmul.mubr.f32.gmra.mrb[0].mxu0 %v506
      %v625 = vpop.f32.mrb[0].mxu0
      %v626 = vadd.f32 %v498, %v625
      %v627 = vpop.f32.mrb[0].mxu0
      %628 = vmatprep.mubr.f32.mxu0 0.0
      %629 = vmatmul.mubr.f32.gmra.mrb[0].mxu0 %v509
      %v630 = vpop.f32.mrb[0].mxu0
      %v631 = vadd.f32 %v503, %v630
      %v632 = vpop.f32.mrb[0].mxu0
      %633 = vdwg.mxu0
      %v634 = vld [vmem:[#allocation2] sm:$0x1]
      %v636 = vlaneseq
      %v637 = vshrl.u32 %v636, 7
      %v638 = vsub.s32 0, %v637
      %v639 = vrot.slane %v634, %v638
      %v641 = vadd.f32 %v626, %v639
      %v642 = vadd.f32 %v631, %v639
      %643 = vmin.xlane.f32.xlu0 %v641
      %v644 = vpop.xlane.xlu0 %643
      %645 = vmin.xlane.f32.xlu0 %v642
      %v646 = vpop.xlane.xlu0 %645
      %v647 = vld [vmem:[#allocation4] sm:$0x1]
      %v648 = vmul.f32 %v644, %v292
      %v649 = vmul.f32 %v646, %v293
      %vm650 = vcmask 7168
      %v651 = vsel %vm650, %v648, 0.0
      %v652 = vsel %vm650, %v649, 0.0
      %v653 = vadd.f32 %v651, %v652
      %654 = vadd.xlane.f32.xlu0 %v653
      %v655 = vpop.xlane.xlu0 %654
      %v656 = vrot.slane %v655, 4
      %v657 = vadd.f32 %v655, %v656
      %v658 = vrot.slane %v657, 2
      %v659 = vadd.f32 %v657, %v658
      %v660 = vrot.slane %v659, 1
      %v661 = vadd.f32 %v659, %v660
      %s662 = vtos %v661
      %v663 = vstv %s662
      %v664 = vadd.f32 %v647, %v663
      %vm665 = vcmask 0
      %666 = vst.msk [vmem:[#allocation4] sm:$0x1] %vm665, %v664
      %v667 = vld [vmem:[#allocation5] sm:$0x1]
      %v668 = vsel %vm650, %v292, 0.0
      %v669 = vsel %vm650, %v293, 0.0
      %v670 = vadd.f32 %v668, %v669
      %671 = vadd.xlane.f32.xlu0 %v670
      %v672 = vpop.xlane.xlu0 %671
      %v673 = vrot.slane %v672, 4
      %v674 = vadd.f32 %v672, %v673
      %v675 = vrot.slane %v674, 2
      %v676 = vadd.f32 %v674, %v675
      %v677 = vrot.slane %v676, 1
      %v678 = vadd.f32 %v676, %v677
      %s679 = vtos %v678
      %v680 = vstv %s679
      %v681 = vadd.f32 %v667, %v680
      %682 = vst.msk [vmem:[#allocation5] sm:$0x1] %vm665, %v681
      %v683 = vld [vmem:[#allocation3] sm:$0x1]
      %v684 = vmin.f32 %v641, %v642
      %v685 = vrot.slane %v684, 4
      %v686 = vmin.f32 %v684, %v685
      %v687 = vrot.slane %v686, 2
      %v688 = vmin.f32 %v686, %v687
      %v689 = vrot.slane %v688, 1
      %v690 = vmin.f32 %v688, %v689
      %v691 = vmin.f32 %v683, %v690
      %692 = vst [vmem:[#allocation3] sm:$0x1] %v691
      // Predicated region
      $region41: #{tpu_custom_call.1} parent=35 // pred_check
        %p693 = pneg %p295
      $region42: #{tpu_custom_call.1} parent=35 // pred_check_branch
        %695 = sbr.rel (%p693) target = $region44
      $region43: #{tpu_custom_call.1} parent=35 // pred_region
        %vm696 = vcmask 1040384
        %v697 = vsel %vm696, %v294, 0.0
        %698 = vadd.xlane.f32.xlu0 %v697
        %v699 = vpop.xlane.xlu0 %698
        %v700 = vrot.slane %v699, 4
        %v701 = vadd.f32 %v699, %v700
        %v702 = vrot.slane %v701, 2
        %v703 = vadd.f32 %v701, %v702
        %v704 = vrot.slane %v703, 1
        %v705 = vadd.f32 %v703, %v704
        %s706 = vtos %v705
        %v707 = vstv %s706
        %v708 = vld [vmem:[#allocation3] sm:$0x1]
        %v709 = vmul.f32 %v708, %v294
        %v710 = vsel %vm696, %v709, 0.0
        %711 = vadd.xlane.f32.xlu0 %v710
        %v712 = vpop.xlane.xlu0 %711
        %v713 = vrot.slane %v712, 4
        %v714 = vadd.f32 %v712, %v713
        %v715 = vrot.slane %v714, 2
        %v716 = vadd.f32 %v714, %v715
        %v717 = vrot.slane %v716, 1
        %v718 = vadd.f32 %v716, %v717
        %s719 = vtos %v718
        %v720 = vstv %s719
        %v721 = vrcp.pop %v707
        %v722 = vmul.f32 %v720, %v721
        %v723 = vld [vmem:[#allocation4] sm:$0x1]
        %v724 = vld [vmem:[#allocation5] sm:$0x1]
        %v725 = vrcp.pop %v724
        %v726 = vmul.f32 %v723, %v725
        %v727 = vadd.f32 %v726, %v722
        %728 = vst.msk [vmem:[%s291] sm:$0x1] %vm665, %v727
      $region44: #{tpu_custom_call.1} parent=35 // pred_fallthru
        _
      %p729 = scmp.lt.s32.totalorder %s19, 1
      %s730 = scalar_select %p729, %s19, 1
      %s731 = scalar_lea.vmem %s4, %s730
      // Predicated region
      $region45: #{tpu_custom_call.1} parent=35 // pred_check
        %p732 = pneg %p153
      $region46: #{tpu_custom_call.1} parent=35 // pred_check_branch
        %734 = sbr.rel (%p732) target = $region48
      $region47: #{tpu_custom_call.1} parent=35 // pred_region
        _
      $region48: #{tpu_custom_call.1} parent=35 // pred_fallthru
        _
    $region36: #{tpu_custom_call.1} parent=5 // pred_fallthru
      _
    %p735 = scmp.le.s32.totalorder 2, %s10
    // Predicated region
    $region49: #{tpu_custom_call.1} parent=5 // pred_check
      %p736 = pneg %p735
    $region50: #{tpu_custom_call.1} parent=5 // pred_check_branch
      %738 = sbr.rel (%p736) target = $region52
    $region51: #{tpu_custom_call.1} parent=5 // pred_region
      %s739 = ssub.s32 %s10, 2
      // Predicated region
      $region53: #{tpu_custom_call.1} parent=51 // pred_check
        %p740 = pneg %p159
      $region54: #{tpu_custom_call.1} parent=51 // pred_check_branch
        %742 = sbr.rel (%p740) target = $region56
      $region55: #{tpu_custom_call.1} parent=51 // pred_region
        %p743 = scmp.lt.s32.totalorder %s21, 1
        %s744 = scalar_select %p743, %s21, 1
        %s745 = scalar_lea.vmem %s4, %s744
      $region56: #{tpu_custom_call.1} parent=51 // pred_fallthru
        _
    $region52: #{tpu_custom_call.1} parent=5 // pred_fallthru
      _
  $region6: #{tpu_custom_call.1} parent=0 // loop_footer
    %s14 = sadd.s32 1, %s10
  $region7: #{tpu_custom_call.1} parent=0 // loop_footer_branch
    %9 = sbr.rel target = $region3
  $region8: #{tpu_custom_call.1} parent=0 // loop_exit
    _

</llo_original>
